<compile_context>
chip_gen: v5e
topology: v5e:2x2
jax: 0.10.0
libtpu: 0.0.40
codegen_flags: <defaults>
</compile_context>

<pallas_src>
import functools

import jax
import jax.numpy as jnp
from jax.experimental import pallas as pl
from jax.experimental.pallas import tpu as pltpu

SMOOTH = 1e-5
LANE = 128
ROW_ALIGN = 32                       # int8 sublane tile is (32, 128)
_HBM_BLOCK_BYTES = 8 * 1024 * 1024   # target streamed score block per step
_F32_BLOCK_BYTES = 4 * 1024 * 1024   # bound on in-kernel f32 working block
_VMEM_LIMIT = 32 * 1024 * 1024       # >= default scoped VMEM on all chips


def _dice_partial_kernel(labels_ref, score_ref, out_ref, *, n_classes,
                         apply_softmax):
    """Per-(batch, spatial-tile) packed partial sums for soft Dice.

    labels_ref : (1, TR, 128) int8/int32, padding = -1 (never matches a class)
    score_ref  : (1, C, TR, 128) streamed dtype
    out_ref    : (1, 1, 3*C, 128) f32 packed partials:
                 rows [0, C)   = per-class intersect
                 rows [C, 2C)  = per-class sum(score^2)
                 rows [2C, 3C) = per-class sum(one_hot)
    """
    labels = labels_ref[0].astype(jnp.int32)             # (TR, 128)
    s = score_ref[0].astype(jnp.float32)                 # (C, TR, 128)

    if apply_softmax:
        m = jnp.max(s, axis=0, keepdims=True)
        e = jnp.exp(s - m)
        den = jnp.sum(e, axis=0, keepdims=True)           # (1, TR, 128)
        # One exact reciprocal + C multiplies instead of C full-size divides.
        s = e * pl.reciprocal(den, approx=False)

    inter_rows, z_rows, y_rows = [], [], []
    for c in range(n_classes):                            # C is small & static
        sc = s[c]                                         # (TR, 128)
        hit_f = (labels == c).astype(jnp.float32)         # (TR, 128), reused
        inter_rows.append(jnp.sum(hit_f * sc, axis=0, keepdims=True))
        z_rows.append(jnp.sum(sc * sc, axis=0, keepdims=True))
        y_rows.append(jnp.sum(hit_f, axis=0, keepdims=True))

    # Single unmasked, lane-dense (3C, 128) store per grid step.
    out_ref[0, 0] = jnp.concatenate(inter_rows + z_rows + y_rows, axis=0)


def _pick_tiling(m_raw, n_classes, itemsize, batch):
    """Pick rows-per-tile / padded rows / #tiles for the flat spatial axis."""
    bytes_per_row_in = n_classes * LANE * itemsize    # streamed score bytes
    bytes_per_row_f32 = n_classes * LANE * 4          # in-kernel f32 work set
    tr_budget = min(_HBM_BLOCK_BYTES // bytes_per_row_in,
                    _F32_BLOCK_BYTES // bytes_per_row_f32)
    tr_budget = max(ROW_ALIGN, (tr_budget // ROW_ALIGN) * ROW_ALIGN)

    num_tiles = pl.cdiv(m_raw, tr_budget)
    if batch == 1 and num_tiles == 1 and m_raw >= 2 * ROW_ALIGN:
        num_tiles = 2          # give both v7x TensorCores a grid step
    if num_tiles == 1:
        tr = m_raw             # block == full dim; any size is legal
    else:
        # Balance the tiles, keep rows a multiple of 32 (int8 tiling).
        tr = min(tr_budget,
                 pl.cdiv(pl.cdiv(m_raw, num_tiles), ROW_ALIGN) * ROW_ALIGN)
    m_pad = pl.cdiv(m_raw, tr) * tr
    return tr, m_pad, m_pad // tr


@functools.partial(jax.jit, static_argnames=("softmax",))
def dice_loss(inputs, target, weight=None, softmax=False):
    """Pallas implementation of DiceLoss.forward.

    inputs: (B, C, H, W) scores/logits (any float dtype; streamed as-is)
    target: (B, 1, H, W) class indices (any numeric dtype)
    weight: optional per-class weights of length C
    """
    B, C, H, W = inputs.shape
    assert target.shape == (B, 1, H, W), "predict & target shape do not match"

    if weight is None:
        weight = jnp.ones((C,), jnp.float32)
    else:
        weight = jnp.asarray(weight, jnp.float32)

    HW = H * W
    m_raw = pl.cdiv(HW, LANE)
    tr, m_pad, num_m = _pick_tiling(m_raw, C, inputs.dtype.itemsize, B)
    hw_pad = m_pad * LANE

    # int8 labels cut label HBM traffic 4x; fall back to int32 for huge C.
    label_dtype = jnp.int8 if C <= 127 else jnp.int32

    # Free NCHW views; only the ragged tail is padded (no transpose).
    scores = inputs.reshape(B, C, HW)
    labels = target.reshape(B, HW).astype(label_dtype)
    if hw_pad != HW:
        scores = jnp.pad(scores, ((0, 0), (0, 0), (0, hw_pad - HW)))
        labels = jnp.pad(labels, ((0, 0), (0, hw_pad - HW)),
                         constant_values=-1)
    scores = scores.reshape(B, C, m_pad, LANE)
    labels = labels.reshape(B, m_pad, LANE)

    kernel = functools.partial(
        _dice_partial_kernel, n_classes=C, apply_softmax=bool(softmax))

    packed = pl.pallas_call(
        kernel,
        out_shape=jax.ShapeDtypeStruct((B, num_m, 3 * C, LANE), jnp.float32),
        grid=(B, num_m),
        in_specs=[
            pl.BlockSpec((1, tr, LANE), lambda b, m: (b, m, 0)),        # labels
            pl.BlockSpec((1, C, tr, LANE), lambda b, m: (b, 0, m, 0)),  # scores
        ],
        out_specs=pl.BlockSpec((1, 1, 3 * C, LANE), lambda b, m: (b, m, 0, 0)),
        compiler_params=pltpu.CompilerParams(
            dimension_semantics=("parallel", "parallel"),
            vmem_limit_bytes=_VMEM_LIMIT),
    )(labels, scores)

    # Tiny finalization in plain JAX: finish lane/tile sums, subtract the
    # closed-form padded softmax contribution, dice formula, weights, mean.
    sums = jnp.sum(packed, axis=(0, 1, 3))           # (3C,)
    intersect = sums[:C]
    z_sum = sums[C:2 * C]
    y_sum = sums[2 * C:]
    if softmax and hw_pad != HW:
        # Padded columns are all-zero -> softmax = 1/C exactly per class.
        inv_c = jnp.float32(1.0) / jnp.float32(C)
        z_sum = z_sum - jnp.float32(B * (hw_pad - HW)) * inv_c * inv_c
    dice = 1.0 - (2.0 * intersect + SMOOTH) / (z_sum + y_sum + SMOOTH)
    return jnp.sum(dice * weight) / jnp.float32(C)


def _reference_dice_loss(inputs, target, weight=None, softmax=False):
    """Pure-JAX reference mirroring the PyTorch module."""
    B, C, H, W = inputs.shape
    if softmax:
        inputs = jax.nn.softmax(inputs, axis=1)
    if weight is None:
        weight = [1.0] * C
    lbl = target[:, 0].astype(jnp.int32)  # (B, H, W)
    loss = 0.0
    for i in range(C):
        score = inputs[:, i].astype(jnp.float32)
        tgt = (lbl == i).astype(jnp.float32)
        intersect = jnp.sum(score * tgt)
        y_sum = jnp.sum(tgt * tgt)
        z_sum = jnp.sum(score * score)
        dice = 1.0 - (2.0 * intersect + SMOOTH) / (z_sum + y_sum + SMOOTH)
        loss = loss + dice * weight[i]
    return loss / C


if __name__ == "__main__":
    key = jax.random.PRNGKey(0)
    k_in, k_tg, k_in2, k_tg2, k_in3, k_tg3, k_in4, k_tg4 = jax.random.split(key, 8)

    # 1) Basic softmax=True path (softmax fused in-kernel).
    B, C, H, W = 2, 4, 16, 16
    inputs = jax.random.normal(k_in, (B, C, H, W), dtype=jnp.float32)
    target = jax.random.randint(k_tg, (B, 1, H, W), 0, C).astype(jnp.float32)
    loss = dice_loss(inputs, target, softmax=True)
    jax.block_until_ready(loss)
    ref = _reference_dice_loss(inputs, target, softmax=True)
    assert jnp.allclose(loss, ref, atol=1e-5, rtol=1e-5), (float(loss), float(ref))

    # 2) softmax=False path with per-class weights.
    w = jnp.asarray([0.5, 1.0, 2.0, 1.5], jnp.float32)
    probs = jax.nn.softmax(inputs, axis=1)
    loss2 = dice_loss(probs, target, weight=w, softmax=False)
    jax.block_until_ready(loss2)
    ref2 = _reference_dice_loss(probs, target, weight=w, softmax=False)
    assert jnp.allclose(loss2, ref2, atol=1e-5, rtol=1e-5), (float(loss2), float(ref2))

    # 3) Non-128-aligned spatial size + non-power-of-2 C exercises the
    #    tail-padding path and the closed-form z_sum correction.
    C3, H3, W3 = 3, 12, 12
    inputs3 = jax.random.normal(k_in2, (B, C3, H3, W3), dtype=jnp.float32)
    target3 = jax.random.randint(k_tg2, (B, 1, H3, W3), 0, C3).astype(jnp.float32)
    loss3 = dice_loss(inputs3, target3, softmax=True)
    jax.block_until_ready(loss3)
    ref3 = _reference_dice_loss(inputs3, target3, softmax=True)
    assert jnp.allclose(loss3, ref3, atol=1e-5, rtol=1e-5), (float(loss3), float(ref3))

    # 4) B == 1 larger image exercises the multi-tile / forced 2-step grid
    #    path with int8 labels and 32-aligned spatial tiles.
    H4, W4 = 512, 512
    inputs4 = jax.random.normal(k_in3, (1, C, H4, W4), dtype=jnp.float32)
    target4 = jax.random.randint(k_tg3, (1, 1, H4, W4), 0, C).astype(jnp.float32)
    loss4 = dice_loss(inputs4, target4, softmax=True)
    jax.block_until_ready(loss4)
    ref4 = _reference_dice_loss(inputs4, target4, softmax=True)
    assert jnp.allclose(loss4, ref4, atol=1e-4, rtol=1e-4), (float(loss4), float(ref4))

    print("KERNEL_OK")
</pallas_src>

<mosaic_0001>
module attributes {stable_mosaic.version = 11 : i64} {
  func.func @_dice_partial_kernel(%arg0: i32, %arg1: i32, %arg2: memref<1x2x128xi8, #tpu.memory_space<vmem>>, %arg3: memref<1x4x2x128xf32, #tpu.memory_space<vmem>>, %arg4: memref<1x1x12x128xf32, #tpu.memory_space<vmem>>) attributes {dimension_semantics = [#tpu.dimension_semantics<parallel>, #tpu.dimension_semantics<parallel>], iteration_bounds = array<i64: 2, 1>, scalar_prefetch = 0 : i64, scratch_operands = 0 : i64, tpu.core_type = #tpu.core_type<tc>, window_params = [{transform_indices = @transform_0, window_bounds = array<i64: 1, 2, 128>}, {transform_indices = @transform_1, window_bounds = array<i64: 1, 4, 2, 128>}, {transform_indices = @transform_2, window_bounds = array<i64: 1, 1, 12, 128>}]} {
    %c0 = arith.constant 0 : index
    %c0_0 = arith.constant 0 : index
    %c0_1 = arith.constant 0 : index
    %0 = vector.load %arg2[%c0, %c0_0, %c0_1] : memref<1x2x128xi8, #tpu.memory_space<vmem>>, vector<1x2x128xi8>
    %1 = vector.shape_cast %0 : vector<1x2x128xi8> to vector<2x128xi8>
    %2 = arith.extsi %1 : vector<2x128xi8> to vector<2x128xi32>
    %c0_2 = arith.constant 0 : index
    %c0_3 = arith.constant 0 : index
    %c0_4 = arith.constant 0 : index
    %c0_5 = arith.constant 0 : index
    %3 = vector.load %arg3[%c0_2, %c0_3, %c0_4, %c0_5] : memref<1x4x2x128xf32, #tpu.memory_space<vmem>>, vector<1x4x2x128xf32>
    %4 = vector.shape_cast %3 : vector<1x4x2x128xf32> to vector<4x2x128xf32>
    %cst = arith.constant dense<0xFF800000> : vector<2x128xf32>
    %5 = vector.multi_reduction <maximumf>, %4, %cst [0] : vector<4x2x128xf32> to vector<2x128xf32>
    %6 = vector.shape_cast %5 : vector<2x128xf32> to vector<1x2x128xf32>
    %7 = vector.broadcast %6 : vector<1x2x128xf32> to vector<4x2x128xf32>
    %8 = arith.subf %4, %7 : vector<4x2x128xf32>
    %9 = math.exp %8 : vector<4x2x128xf32>
    %cst_6 = arith.constant dense<0.000000e+00> : vector<2x128xf32>
    %10 = vector.multi_reduction <add>, %9, %cst_6 [0] : vector<4x2x128xf32> to vector<2x128xf32>
    %11 = vector.shape_cast %10 : vector<2x128xf32> to vector<1x2x128xf32>
    %12 = tpu.reciprocal %11 : vector<1x2x128xf32> -> vector<1x2x128xf32>
    %13 = vector.broadcast %12 : vector<1x2x128xf32> to vector<4x2x128xf32>
    %14 = arith.mulf %9, %13 : vector<4x2x128xf32>
    %15 = vector.extract_strided_slice %14 {offsets = [0, 0, 0], sizes = [1, 2, 128], strides = [1, 1, 1]} : vector<4x2x128xf32> to vector<1x2x128xf32>
    %16 = vector.shape_cast %15 : vector<1x2x128xf32> to vector<2x128xf32>
    %c0_i32 = arith.constant 0 : i32
    %17 = vector.broadcast %c0_i32 : i32 to vector<2x128xi32>
    %18 = arith.cmpi eq, %2, %17 : vector<2x128xi32>
    %19 = arith.extui %18 : vector<2x128xi1> to vector<2x128xi32>
    %20 = arith.sitofp %19 : vector<2x128xi32> to vector<2x128xf32>
    %21 = arith.mulf %20, %16 : vector<2x128xf32>
    %cst_7 = arith.constant dense<0.000000e+00> : vector<128xf32>
    %22 = vector.multi_reduction <add>, %21, %cst_7 [0] : vector<2x128xf32> to vector<128xf32>
    %23 = vector.shape_cast %22 : vector<128xf32> to vector<1x128xf32>
    %24 = arith.mulf %16, %16 : vector<2x128xf32>
    %cst_8 = arith.constant dense<0.000000e+00> : vector<128xf32>
    %25 = vector.multi_reduction <add>, %24, %cst_8 [0] : vector<2x128xf32> to vector<128xf32>
    %26 = vector.shape_cast %25 : vector<128xf32> to vector<1x128xf32>
    %cst_9 = arith.constant dense<0.000000e+00> : vector<128xf32>
    %27 = vector.multi_reduction <add>, %20, %cst_9 [0] : vector<2x128xf32> to vector<128xf32>
    %28 = vector.shape_cast %27 : vector<128xf32> to vector<1x128xf32>
    %29 = vector.extract_strided_slice %14 {offsets = [1, 0, 0], sizes = [1, 2, 128], strides = [1, 1, 1]} : vector<4x2x128xf32> to vector<1x2x128xf32>
    %30 = vector.shape_cast %29 : vector<1x2x128xf32> to vector<2x128xf32>
    %c1_i32 = arith.constant 1 : i32
    %31 = vector.broadcast %c1_i32 : i32 to vector<2x128xi32>
    %32 = arith.cmpi eq, %2, %31 : vector<2x128xi32>
    %33 = arith.extui %32 : vector<2x128xi1> to vector<2x128xi32>
    %34 = arith.sitofp %33 : vector<2x128xi32> to vector<2x128xf32>
    %35 = arith.mulf %34, %30 : vector<2x128xf32>
    %cst_10 = arith.constant dense<0.000000e+00> : vector<128xf32>
    %36 = vector.multi_reduction <add>, %35, %cst_10 [0] : vector<2x128xf32> to vector<128xf32>
    %37 = vector.shape_cast %36 : vector<128xf32> to vector<1x128xf32>
    %38 = arith.mulf %30, %30 : vector<2x128xf32>
    %cst_11 = arith.constant dense<0.000000e+00> : vector<128xf32>
    %39 = vector.multi_reduction <add>, %38, %cst_11 [0] : vector<2x128xf32> to vector<128xf32>
    %40 = vector.shape_cast %39 : vector<128xf32> to vector<1x128xf32>
    %cst_12 = arith.constant dense<0.000000e+00> : vector<128xf32>
    %41 = vector.multi_reduction <add>, %34, %cst_12 [0] : vector<2x128xf32> to vector<128xf32>
    %42 = vector.shape_cast %41 : vector<128xf32> to vector<1x128xf32>
    %43 = vector.extract_strided_slice %14 {offsets = [2, 0, 0], sizes = [1, 2, 128], strides = [1, 1, 1]} : vector<4x2x128xf32> to vector<1x2x128xf32>
    %44 = vector.shape_cast %43 : vector<1x2x128xf32> to vector<2x128xf32>
    %c2_i32 = arith.constant 2 : i32
    %45 = vector.broadcast %c2_i32 : i32 to vector<2x128xi32>
    %46 = arith.cmpi eq, %2, %45 : vector<2x128xi32>
    %47 = arith.extui %46 : vector<2x128xi1> to vector<2x128xi32>
    %48 = arith.sitofp %47 : vector<2x128xi32> to vector<2x128xf32>
    %49 = arith.mulf %48, %44 : vector<2x128xf32>
    %cst_13 = arith.constant dense<0.000000e+00> : vector<128xf32>
    %50 = vector.multi_reduction <add>, %49, %cst_13 [0] : vector<2x128xf32> to vector<128xf32>
    %51 = vector.shape_cast %50 : vector<128xf32> to vector<1x128xf32>
    %52 = arith.mulf %44, %44 : vector<2x128xf32>
    %cst_14 = arith.constant dense<0.000000e+00> : vector<128xf32>
    %53 = vector.multi_reduction <add>, %52, %cst_14 [0] : vector<2x128xf32> to vector<128xf32>
    %54 = vector.shape_cast %53 : vector<128xf32> to vector<1x128xf32>
    %cst_15 = arith.constant dense<0.000000e+00> : vector<128xf32>
    %55 = vector.multi_reduction <add>, %48, %cst_15 [0] : vector<2x128xf32> to vector<128xf32>
    %56 = vector.shape_cast %55 : vector<128xf32> to vector<1x128xf32>
    %57 = vector.extract_strided_slice %14 {offsets = [3, 0, 0], sizes = [1, 2, 128], strides = [1, 1, 1]} : vector<4x2x128xf32> to vector<1x2x128xf32>
    %58 = vector.shape_cast %57 : vector<1x2x128xf32> to vector<2x128xf32>
    %c3_i32 = arith.constant 3 : i32
    %59 = vector.broadcast %c3_i32 : i32 to vector<2x128xi32>
    %60 = arith.cmpi eq, %2, %59 : vector<2x128xi32>
    %61 = arith.extui %60 : vector<2x128xi1> to vector<2x128xi32>
    %62 = arith.sitofp %61 : vector<2x128xi32> to vector<2x128xf32>
    %63 = arith.mulf %62, %58 : vector<2x128xf32>
    %cst_16 = arith.constant dense<0.000000e+00> : vector<128xf32>
    %64 = vector.multi_reduction <add>, %63, %cst_16 [0] : vector<2x128xf32> to vector<128xf32>
    %65 = vector.shape_cast %64 : vector<128xf32> to vector<1x128xf32>
    %66 = arith.mulf %58, %58 : vector<2x128xf32>
    %cst_17 = arith.constant dense<0.000000e+00> : vector<128xf32>
    %67 = vector.multi_reduction <add>, %66, %cst_17 [0] : vector<2x128xf32> to vector<128xf32>
    %68 = vector.shape_cast %67 : vector<128xf32> to vector<1x128xf32>
    %cst_18 = arith.constant dense<0.000000e+00> : vector<128xf32>
    %69 = vector.multi_reduction <add>, %62, %cst_18 [0] : vector<2x128xf32> to vector<128xf32>
    %70 = vector.shape_cast %69 : vector<128xf32> to vector<1x128xf32>
    %71 = tpu.concatenate %23, %37, %51, %65, %26, %40, %54, %68, %28, %42, %56, %70 in 0 : vector<1x128xf32>, vector<1x128xf32>, vector<1x128xf32>, vector<1x128xf32>, vector<1x128xf32>, vector<1x128xf32>, vector<1x128xf32>, vector<1x128xf32>, vector<1x128xf32>, vector<1x128xf32>, vector<1x128xf32>, vector<1x128xf32> -> vector<12x128xf32>
    %c0_19 = arith.constant 0 : index
    %c0_20 = arith.constant 0 : index
    %c0_21 = arith.constant 0 : index
    %c0_22 = arith.constant 0 : index
    %72 = vector.load %arg4[%c0_19, %c0_20, %c0_21, %c0_22] : memref<1x1x12x128xf32, #tpu.memory_space<vmem>>, vector<1x1x12x128xf32>
    %73 = vector.shape_cast %72 : vector<1x1x12x128xf32> to vector<12x128xf32>
    %74 = vector.shape_cast %71 : vector<12x128xf32> to vector<1x1x12x128xf32>
    tpu.vector_store %arg4[%c0_19, %c0_20, %c0_21, %c0_22], %74 {strides = array<i32>} : memref<1x1x12x128xf32, #tpu.memory_space<vmem>>, vector<1x1x12x128xf32>,
    return
  }
  func.func @transform_0(%arg0: i32, %arg1: i32) -> (i32, i32, i32) {
    %c0_i32 = arith.constant 0 : i32
    %c0_i32_0 = arith.constant 0 : i32
    return %arg0, %arg1, %c0_i32 : i32, i32, i32
  }
  func.func @transform_1(%arg0: i32, %arg1: i32) -> (i32, i32, i32, i32) {
    %c0_i32 = arith.constant 0 : i32
    %c0_i32_0 = arith.constant 0 : i32
    %c0_i32_1 = arith.constant 0 : i32
    return %arg0, %c0_i32, %arg1, %c0_i32_0 : i32, i32, i32, i32
  }
  func.func @transform_2(%arg0: i32, %arg1: i32) -> (i32, i32, i32, i32) {
    %c0_i32 = arith.constant 0 : i32
    %c0_i32_0 = arith.constant 0 : i32
    %c0_i32_1 = arith.constant 0 : i32
    return %arg0, %arg1, %c0_i32, %c0_i32_0 : i32, i32, i32, i32
  }
}

</mosaic_0001>

<llo_original>
// kernel: dice_loss.1
$region0: #{dice_loss.1}
  #allocation0 [shape = 'u32[]', space=smem, size = 0x4, offset = 0x4, fixed_abs, tag = 'smem constant byte address 0x4 - core index']
  #allocation1 [shape = 'u32[72,128]{1,0:T(1,128)}', space=vmem, size = 0x9000, scoped, tag = 'internal scratch']
  %s0 = inlined_call_operand.vmem [shape: s8[2,2,128], index: 0, kind: input, shape index: {}]
  %s1 = inlined_call_operand.vmem [shape: f32[2,4,2,128], index: 1, kind: input, shape index: {}]
  %s2 = inlined_call_operand.vmem [shape: f32[2,1,12,128], index: 2, kind: output, shape index: {}]
  %s3 = sld [smem:[#allocation0]]
  $region41: #{dice_loss.1} parent=0
    _
  %s5 = ssub.s32 1, %s3
  %s6 = scalar_select 0, %s5, %s3
  loop: start=0, step=1, limit=4
  $region2: #{dice_loss.1} parent=0 // loop_pre_header
    _
  $region3: #{dice_loss.1} parent=0 // loop_header
    %s8 = sphi 0, %s12
    %p9 = scmp.ge.s32.totalorder %s8, 4
    %s15 = sphi 0, %s27
    %s16 = sphi 0, %s23
    %s17 = sphi 0, %s15
    %s18 = sphi 0, %s16
    %s19 = sphi 0, %s17
    %s20 = sphi 0, %s18
    %s32 = sphi 0, %s34
    %s35 = sphi 0, %s32
    %s36 = sphi 0, %s35
    %s52 = sphi 0, %s36
    %s60 = sphi 0, %s62
    %s63 = sphi 0, %s60
    %s64 = sphi 0, %s63
    %s80 = sphi 0, %s64
    %s88 = sphi 0, %s90
    %s91 = sphi 0, %s88
    %s92 = sphi 0, %s91
    %s108 = sphi 0, %s92
  $region4: #{dice_loss.1} parent=0 // loop_header_branch
    %11 = sbr.rel (%p9) target = $region8
  $region5: #{dice_loss.1} parent=0 // loop_body
    %s13 = ssub.s32 %s8, 1
    %s14 = ssub.s32 %s8, 2
    %s21 = sadd.s32 1, %s16
    %p22 = scmp.ge.s32.totalorder %s21, 1
    %s23 = scalar_select %p22, 0, %s21
    %s24 = sadd.s32 1, %s15
    %s25 = scalar_select %p22, %s24, %s15
    %p26 = scmp.ge.s32.totalorder %s25, 2
    %s27 = scalar_select %p26, 0, %s25
    %s28 = ssub.s32 %s15, %s27
    %s29 = ssub.s32 %s16, %s23
    %s30 = sor.u32 %s28, %s29
    %p31 = scmp.eq.s32.totalorder %s30, 0
    %s33 = sadd.s32 %s32, 1
    %s34 = scalar_select %p31, %s32, %s33
    %p37 = pneg %p31
    %p38 = scmp.eq.s32.totalorder %s8, 1
    %p39 = por %p37, %p38
    %p40 = scmp.ne.s32.totalorder %s32, %s35
    %p41 = scmp.eq.s32.totalorder %s8, 0
    %p42 = por %p40, %p41
    %p43 = scmp.ne.s32.totalorder %s32, %s35
    %p44 = scmp.eq.s32.totalorder %s13, 1
    %p45 = por %p43, %p44
    %p46 = scmp.ne.s32.totalorder %s35, %s36
    %p47 = scmp.eq.s32.totalorder %s13, 0
    %p48 = por %p46, %p47
    %p49 = scmp.ne.s32.totalorder %s35, %s36
    %p50 = scmp.eq.s32.totalorder %s14, 1
    %p51 = por %p49, %p50
    %p53 = scmp.ne.s32.totalorder %s36, %s52
    %p54 = scmp.eq.s32.totalorder %s14, 0
    %p55 = por %p53, %p54
    %s56 = ssub.s32 %s15, %s27
    %s57 = ssub.s32 %s16, %s23
    %s58 = sor.u32 %s56, %s57
    %p59 = scmp.eq.s32.totalorder %s58, 0
    %s61 = sadd.s32 %s60, 1
    %s62 = scalar_select %p59, %s60, %s61
    %p65 = pneg %p59
    %p66 = scmp.eq.s32.totalorder %s8, 1
    %p67 = por %p65, %p66
    %p68 = scmp.ne.s32.totalorder %s60, %s63
    %p69 = scmp.eq.s32.totalorder %s8, 0
    %p70 = por %p68, %p69
    %p71 = scmp.ne.s32.totalorder %s60, %s63
    %p72 = scmp.eq.s32.totalorder %s13, 1
    %p73 = por %p71, %p72
    %p74 = scmp.ne.s32.totalorder %s63, %s64
    %p75 = scmp.eq.s32.totalorder %s13, 0
    %p76 = por %p74, %p75
    %p77 = scmp.ne.s32.totalorder %s63, %s64
    %p78 = scmp.eq.s32.totalorder %s14, 1
    %p79 = por %p77, %p78
    %p81 = scmp.ne.s32.totalorder %s64, %s80
    %p82 = scmp.eq.s32.totalorder %s14, 0
    %p83 = por %p81, %p82
    %s84 = ssub.s32 %s15, %s27
    %s85 = ssub.s32 %s16, %s23
    %s86 = sor.u32 %s84, %s85
    %p87 = scmp.eq.s32.totalorder %s86, 0
    %s89 = sadd.s32 %s88, 1
    %s90 = scalar_select %p87, %s88, %s89
    %p93 = pneg %p87
    %p94 = scmp.eq.s32.totalorder %s8, 1
    %p95 = por %p93, %p94
    %p96 = scmp.ne.s32.totalorder %s88, %s91
    %p97 = scmp.eq.s32.totalorder %s8, 0
    %p98 = por %p96, %p97
    %p99 = scmp.ne.s32.totalorder %s88, %s91
    %p100 = scmp.eq.s32.totalorder %s13, 1
    %p101 = por %p99, %p100
    %p102 = scmp.ne.s32.totalorder %s91, %s92
    %p103 = scmp.eq.s32.totalorder %s13, 0
    %p104 = por %p102, %p103
    %p105 = scmp.ne.s32.totalorder %s91, %s92
    %p106 = scmp.eq.s32.totalorder %s14, 1
    %p107 = por %p105, %p106
    %p109 = scmp.ne.s32.totalorder %s92, %s108
    %p110 = scmp.eq.s32.totalorder %s14, 0
    %p111 = por %p109, %p110
    %p112 = scmp.le.s32.totalorder 1, %s8
    %p113 = scmp.lt.s32.totalorder %s8, 3
    %p114 = pnand %p112, %p113
    %p115 = pneg %p114
    // Predicated region
    $region9: #{dice_loss.1} parent=5 // pred_check
      _
    $region10: #{dice_loss.1} parent=5 // pred_check_branch
      %117 = sbr.rel (%p114) target = $region12
    $region11: #{dice_loss.1} parent=5 // pred_region
      %s118 = ssub.s32 %s8, 1
    $region12: #{dice_loss.1} parent=5 // pred_fallthru
      _
    %p119 = scmp.lt.s32.totalorder %s8, 2
    // Predicated region
    $region13: #{dice_loss.1} parent=5 // pred_check
      %p120 = pneg %p119
    $region14: #{dice_loss.1} parent=5 // pred_check_branch
      %122 = sbr.rel (%p120) target = $region16
    $region15: #{dice_loss.1} parent=5 // pred_region
      // Predicated region
      $region17: #{dice_loss.1} parent=15 // pred_check
        %p123 = pneg %p42
      $region18: #{dice_loss.1} parent=15 // pred_check_branch
        %125 = sbr.rel (%p123) target = $region20
      $region19: #{dice_loss.1} parent=15 // pred_region
        %p126 = scmp.lt.s32.totalorder %s15, 1
        %s127 = scalar_select %p126, %s15, 1
        %p128 = scmp.lt.s32.totalorder %s16, 0
        %s129 = scalar_select %p128, %s16, 0
        %s130 = sadd.s32 %s129, %s127
        %s131 = scalar_lea.vmem %s0, %s130
      $region20: #{dice_loss.1} parent=15 // pred_fallthru
        _
      // Predicated region
      $region21: #{dice_loss.1} parent=15 // pred_check
        %p132 = pneg %p70
      $region22: #{dice_loss.1} parent=15 // pred_check_branch
        %134 = sbr.rel (%p132) target = $region24
      $region23: #{dice_loss.1} parent=15 // pred_region
        %p135 = scmp.lt.s32.totalorder %s15, 1
        %s136 = scalar_select %p135, %s15, 1
        %p137 = scmp.lt.s32.totalorder %s16, 0
        %s138 = scalar_select %p137, %s16, 0
        %s139 = smul.addr %s136, 4
        %s140 = sadd.s32 %s138, %s139
        %s141 = smul.addr %s140, 2
        %s142 = scalar_lea.vmem %s1, %s141
      $region24: #{dice_loss.1} parent=15 // pred_fallthru
        _
    $region16: #{dice_loss.1} parent=5 // pred_fallthru
      _
    %p143 = scmp.le.s32.totalorder 1, %s8
    %p144 = scmp.lt.s32.totalorder %s8, 3
    %p145 = pnand %p143, %p144
    %p146 = pneg %p145
    // Predicated region
    $region25: #{dice_loss.1} parent=5 // pred_check
      _
    $region26: #{dice_loss.1} parent=5 // pred_check_branch
      %148 = sbr.rel (%p145) target = $region28
    $region27: #{dice_loss.1} parent=5 // pred_region
      %s149 = ssub.s32 %s8, 1
      %p150 = scmp.lt.s32.totalorder %s17, 1
      %s151 = scalar_select %p150, %s17, 1
      %p152 = scmp.lt.s32.totalorder %s18, 0
      %s153 = scalar_select %p152, %s18, 0
      %s154 = sadd.s32 %s153, %s151
      %s155 = scalar_lea.vmem %s0, %s154
      %p156 = pneg %p48
      %p157 = pneg %p45
      %p158 = scmp.lt.s32.totalorder %s17, 1
      %s159 = scalar_select %p158, %s17, 1
      %p160 = scmp.lt.s32.totalorder %s18, 0
      %s161 = scalar_select %p160, %s18, 0
      %s162 = smul.addr %s159, 4
      %s163 = sadd.s32 %s161, %s162
      %s164 = smul.addr %s163, 2
      %s165 = scalar_lea.vmem %s1, %s164
      %p166 = pneg %p76
      %p167 = pneg %p73
      %p168 = pneg %p104
      %p169 = pneg %p101
      %p170 = scmp.lt.s32.totalorder %s17, 1
      %s171 = scalar_select %p170, %s17, 1
      %p172 = scmp.lt.s32.totalorder %s18, 0
      %s173 = scalar_select %p172, %s18, 0
      %s174 = smul.addr %s173, 2
      %s175 = smul.addr %s171, 2
      %s176 = sadd.s32 %s174, %s175
      %s177 = smul.addr %s176, 8
      %s178 = scalar_lea.vmem %s2, %s177
      %p179 = scmp.lt.s32.totalorder %s17, 1
      %s180 = scalar_select %p179, %s17, 1
      %p181 = scmp.lt.s32.totalorder %s18, 0
      %s182 = scalar_select %p181, %s18, 0
      %s183 = sadd.s32 %s182, %s180
      %s184 = scalar_lea.vmem %s0, %s183
      %p185 = scmp.lt.s32.totalorder %s17, 1
      %s186 = scalar_select %p185, %s17, 1
      %p187 = scmp.lt.s32.totalorder %s18, 0
      %s188 = scalar_select %p187, %s18, 0
      %s189 = smul.addr %s186, 4
      %s190 = sadd.s32 %s188, %s189
      %s191 = smul.addr %s190, 2
      %s192 = scalar_lea.vmem %s1, %s191
      %p193 = scmp.lt.s32.totalorder %s17, 1
      %s194 = scalar_select %p193, %s17, 1
      %p195 = scmp.lt.s32.totalorder %s18, 0
      %s196 = scalar_select %p195, %s18, 0
      %s197 = smul.addr %s196, 2
      %s198 = smul.addr %s194, 2
      %s199 = sadd.s32 %s197, %s198
      %s200 = smul.addr %s199, 8
      %s201 = scalar_lea.vmem %s2, %s200
      %v202 = vld [vmem:[%s184] sm:$0x1]
      %v203 = vunpack.c.0.s8 %v202
      %v204 = vld [vmem:[%s192] sm:$0x3]
      %v205 = vld [vmem:[%s192 + $0x2] sm:$0x3]
      %v206 = vld [vmem:[%s192 + $0x4] sm:$0x3]
      %v207 = vld [vmem:[%s192 + $0x6] sm:$0x3]
      %vm208 = vcmask 1041408
      %v209 = vsel %vm208, %v204, -inf
      %v210 = vsel %vm208, %v205, -inf
      %v211 = vsel %vm208, %v206, -inf
      %v212 = vsel %vm208, %v207, -inf
      %v213 = vmax.f32 %v209, %v210
      %v214 = vmax.f32 %v211, %v212
      %v215 = vmax.f32 %v213, %v214
      %v216 = vsub.f32 %v204, %v215
      %v217 = vsub.f32 %v205, %v215
      %v218 = vsub.f32 %v206, %v215
      %v219 = vsub.f32 %v207, %v215
      %v220 = vmul.f32 %v216, 1.442695
      %v221 = vpow.pop %v220
      %v222 = vmul.f32 %v217, 1.442695
      %v223 = vpow.pop %v222
      %v224 = vmul.f32 %v218, 1.442695
      %v225 = vpow.pop %v224
      %v226 = vmul.f32 %v219, 1.442695
      %v227 = vpow.pop %v226
      %v228 = vsel %vm208, %v221, 0.0
      %v229 = vsel %vm208, %v223, 0.0
      %v230 = vadd.f32 %v228, %v229
      %v231 = vsel %vm208, %v225, 0.0
      %v232 = vadd.f32 %v230, %v231
      %v233 = vsel %vm208, %v227, 0.0
      %v234 = vadd.f32 %v232, %v233
      %v235 = vrcp.pop %v234
      %v236 = vmul.f32 %v234, %v235
      %v237 = vsub.f32 1.0, %v236
      %v238 = vmul.f32 %v235, %v237
      %v239 = vadd.f32 %v235, %v238
      %vm240 = vweird.f32 %v234
      %vm241 = vweird.f32 %v235
      %vm242 = vmor %vm240, %vm241
      %v243 = vsel %vm242, %v235, %v239
      %v244 = vand.u32 2147483647, %v234
      %vm245 = vcmp.eq.f32.partialorder %v244, 8.507059e+37
      %v246 = vand.u32 %v234, 2147483648
      %v247 = vor.u32 1.1754944e-38, %v246
      %v248 = vsel %vm245, %v247, %v243
      %v249 = vmul.f32 %v221, %v248
      %v250 = vmul.f32 %v223, %v248
      %v251 = vmul.f32 %v225, %v248
      %v252 = vmul.f32 %v227, %v248
      %vm253 = vcmp.eq.s32.totalorder %v203, 0
      %v254 = vsel %vm253, 1, 0
      %v255 = vcvt.s32.f32 %v254
      %v256 = vmul.f32 %v255, %v249
      %v257 = vsel %vm208, %v256, 0.0
      %v258 = vrot.slane %v257, 4
      %v259 = vadd.f32 %v257, %v258
      %v260 = vrot.slane %v259, 2
      %v261 = vadd.f32 %v259, %v260
      %v262 = vrot.slane %v261, 1
      %v263 = vadd.f32 %v261, %v262
      %v264 = vmul.f32 %v249, %v249
      %v265 = vsel %vm208, %v264, 0.0
      %v266 = vrot.slane %v265, 4
      %v267 = vadd.f32 %v265, %v266
      %v268 = vrot.slane %v267, 2
      %v269 = vadd.f32 %v267, %v268
      %v270 = vrot.slane %v269, 1
      %v271 = vadd.f32 %v269, %v270
      %v272 = vsel %vm208, %v255, 0.0
      %v273 = vrot.slane %v272, 4
      %v274 = vadd.f32 %v272, %v273
      %v275 = vrot.slane %v274, 2
      %v276 = vadd.f32 %v274, %v275
      %v277 = vrot.slane %v276, 1
      %v278 = vadd.f32 %v276, %v277
      %vm279 = vcmp.eq.s32.totalorder %v203, 1
      %v280 = vsel %vm279, 1, 0
      %v281 = vcvt.s32.f32 %v280
      %v282 = vmul.f32 %v281, %v250
      %v283 = vsel %vm208, %v282, 0.0
      %v284 = vrot.slane %v283, 4
      %v285 = vadd.f32 %v283, %v284
      %v286 = vrot.slane %v285, 2
      %v287 = vadd.f32 %v285, %v286
      %v288 = vrot.slane %v287, 1
      %v289 = vadd.f32 %v287, %v288
      %v290 = vmul.f32 %v250, %v250
      %v291 = vsel %vm208, %v290, 0.0
      %v292 = vrot.slane %v291, 4
      %v293 = vadd.f32 %v291, %v292
      %v294 = vrot.slane %v293, 2
      %v295 = vadd.f32 %v293, %v294
      %v296 = vrot.slane %v295, 1
      %v297 = vadd.f32 %v295, %v296
      %v298 = vsel %vm208, %v281, 0.0
      %v299 = vrot.slane %v298, 4
      %v300 = vadd.f32 %v298, %v299
      %v301 = vrot.slane %v300, 2
      %v302 = vadd.f32 %v300, %v301
      %v303 = vrot.slane %v302, 1
      %v304 = vadd.f32 %v302, %v303
      %vm305 = vcmp.eq.s32.totalorder %v203, 2
      %v306 = vsel %vm305, 1, 0
      %v307 = vcvt.s32.f32 %v306
      %v308 = vmul.f32 %v307, %v251
      %v309 = vsel %vm208, %v308, 0.0
      %v310 = vrot.slane %v309, 4
      %v311 = vadd.f32 %v309, %v310
      %v312 = vrot.slane %v311, 2
      %v313 = vadd.f32 %v311, %v312
      %v314 = vrot.slane %v313, 1
      %v315 = vadd.f32 %v313, %v314
      %v316 = vmul.f32 %v251, %v251
      %v317 = vsel %vm208, %v316, 0.0
      %v318 = vrot.slane %v317, 4
      %v319 = vadd.f32 %v317, %v318
      %v320 = vrot.slane %v319, 2
      %v321 = vadd.f32 %v319, %v320
      %v322 = vrot.slane %v321, 1
      %v323 = vadd.f32 %v321, %v322
      %v324 = vsel %vm208, %v307, 0.0
      %v325 = vrot.slane %v324, 4
      %v326 = vadd.f32 %v324, %v325
      %v327 = vrot.slane %v326, 2
      %v328 = vadd.f32 %v326, %v327
      %v329 = vrot.slane %v328, 1
      %v330 = vadd.f32 %v328, %v329
      %vm331 = vcmp.eq.s32.totalorder %v203, 3
      %v332 = vsel %vm331, 1, 0
      %v333 = vcvt.s32.f32 %v332
      %v334 = vmul.f32 %v333, %v252
      %v335 = vsel %vm208, %v334, 0.0
      %v336 = vrot.slane %v335, 4
      %v337 = vadd.f32 %v335, %v336
      %v338 = vrot.slane %v337, 2
      %v339 = vadd.f32 %v337, %v338
      %v340 = vrot.slane %v339, 1
      %v341 = vadd.f32 %v339, %v340
      %v342 = vmul.f32 %v252, %v252
      %v343 = vsel %vm208, %v342, 0.0
      %v344 = vrot.slane %v343, 4
      %v345 = vadd.f32 %v343, %v344
      %v346 = vrot.slane %v345, 2
      %v347 = vadd.f32 %v345, %v346
      %v348 = vrot.slane %v347, 1
      %v349 = vadd.f32 %v347, %v348
      %v350 = vsel %vm208, %v333, 0.0
      %v351 = vrot.slane %v350, 4
      %v352 = vadd.f32 %v350, %v351
      %v353 = vrot.slane %v352, 2
      %v354 = vadd.f32 %v352, %v353
      %v355 = vrot.slane %v354, 1
      %v356 = vadd.f32 %v354, %v355
      %vm357 = vcmask 1040384
      %v358 = vsel %vm357, %v263, %v289
      %v359 = vsel %vm208, %v358, %v315
      %vm360 = vcmask 1042432
      %v361 = vsel %vm360, %v359, %v341
      %vm362 = vcmask 1043456
      %v363 = vsel %vm362, %v361, %v271
      %vm364 = vcmask 1044480
      %v365 = vsel %vm364, %v363, %v297
      %vm366 = vcmask 1045504
      %v367 = vsel %vm366, %v365, %v323
      %vm368 = vcmask 1046528
      %v369 = vsel %vm368, %v367, %v349
      %v370 = vsel %vm357, %v278, %v304
      %v371 = vsel %vm208, %v370, %v330
      %v372 = vsel %vm360, %v371, %v356
      %373 = vst [vmem:[%s201] sm:$0xff] %v369
      %374 = vst [vmem:[%s201 + $0x8] sm:$0xf] %v372
      %p375 = scmp.lt.s32.totalorder %s17, 1
      %s376 = scalar_select %p375, %s17, 1
      %p377 = scmp.lt.s32.totalorder %s18, 0
      %s378 = scalar_select %p377, %s18, 0
      %s379 = smul.addr %s378, 2
      %s380 = smul.addr %s376, 2
      %s381 = sadd.s32 %s379, %s380
      %s382 = smul.addr %s381, 8
      %s383 = scalar_lea.vmem %s2, %s382
      // Predicated region
      $region29: #{dice_loss.1} parent=27 // pred_check
        %p384 = pneg %p101
      $region30: #{dice_loss.1} parent=27 // pred_check_branch
        %386 = sbr.rel (%p384) target = $region32
      $region31: #{dice_loss.1} parent=27 // pred_region
        _
      $region32: #{dice_loss.1} parent=27 // pred_fallthru
        _
    $region28: #{dice_loss.1} parent=5 // pred_fallthru
      _
    %p387 = scmp.le.s32.totalorder 2, %s8
    // Predicated region
    $region33: #{dice_loss.1} parent=5 // pred_check
      %p388 = pneg %p387
    $region34: #{dice_loss.1} parent=5 // pred_check_branch
      %390 = sbr.rel (%p388) target = $region36
    $region35: #{dice_loss.1} parent=5 // pred_region
      %s391 = ssub.s32 %s8, 2
      // Predicated region
      $region37: #{dice_loss.1} parent=35 // pred_check
        %p392 = pneg %p107
      $region38: #{dice_loss.1} parent=35 // pred_check_branch
        %394 = sbr.rel (%p392) target = $region40
      $region39: #{dice_loss.1} parent=35 // pred_region
        %p395 = scmp.lt.s32.totalorder %s19, 1
        %s396 = scalar_select %p395, %s19, 1
        %p397 = scmp.lt.s32.totalorder %s20, 0
        %s398 = scalar_select %p397, %s20, 0
        %s399 = smul.addr %s398, 2
        %s400 = smul.addr %s396, 2
        %s401 = sadd.s32 %s399, %s400
        %s402 = smul.addr %s401, 8
        %s403 = scalar_lea.vmem %s2, %s402
      $region40: #{dice_loss.1} parent=35 // pred_fallthru
        _
    $region36: #{dice_loss.1} parent=5 // pred_fallthru
      _
  $region6: #{dice_loss.1} parent=0 // loop_footer
    %s12 = sadd.s32 1, %s8
  $region7: #{dice_loss.1} parent=0 // loop_footer_branch
    %7 = sbr.rel target = $region3
  $region8: #{dice_loss.1} parent=0 // loop_exit
    _

</llo_original>
